<compile_context>
chip_gen: v7x
topology: tpu7x:2x2x1
jax: 0.10.0
libtpu: 0.0.40
codegen_flags: <defaults>
</compile_context>

<pallas_src>
import functools

import jax
import jax.numpy as jnp
from jax.experimental import pallas as pl
from jax.experimental.pallas import tpu as pltpu

SMOOTH = 1e-05
LANES = 128
SUBLANES = 8
DEFAULT_TILE_ROWS = 8192     # 4 MiB per f32 input block
DEFAULT_CHUNK_ROWS = 1024    # in-kernel fold granularity (128 vregs per f32 input)
VMEM_LIMIT_BYTES = 32 * 1024 * 1024
INPUT_BUF_BUDGET = 24 * 1024 * 1024  # double-buffered input blocks budget


def _round_up(x: int, m: int) -> int:
    return ((x + m - 1) // m) * m


def _sublane_pack(dtype) -> int:
    # Minimum second-to-last block dim for this dtype's packed layout:
    # f32 -> 8, bf16 -> 16, int8/fp8/bool -> 32.
    itemsize = max(1, min(4, jnp.dtype(dtype).itemsize))
    return SUBLANES * (4 // itemsize)


def _num_tensorcores() -> int:
    # 2 on v7x (two TensorCores per chip), 1 on v5e/v6e.  Falls back to 1 if
    # the runtime query is unavailable.
    try:
        info = pltpu.get_tpu_info()
    except Exception:
        return 1
    for name in ("num_cores", "num_tensorcores", "tensorcore_count", "core_count"):
        n = getattr(info, name, None)
        try:
            n = int(n)
        except (TypeError, ValueError):
            continue
        if n >= 1:
            return max(1, min(2, n))
    return 1


def _dice_partial_kernel(pred_ref, true_ref, out_ref, *,
                         tile_rows, chunk_rows, steps_per_core,
                         nblocks, rows, mask_tail):
    c = pl.program_id(0)          # core split ("parallel")
    s = pl.program_id(1)          # sequential reduction steps ("arbitrary")

    @pl.when(s == 0)
    def _init():
        out_ref[...] = jnp.zeros_like(out_ref)   # output block is VMEM-resident across s

    b = c * steps_per_core + s    # global (unclamped) block index

    @pl.when(b < nblocks)         # skip clamped over-range steps entirely
    def _compute():
        n_chunks = tile_rows // chunk_rows

        def fold(ci, masked):
            r0 = ci * chunk_rows
            if not isinstance(r0, int):
                r0 = pl.multiple_of(r0, chunk_rows)
            # cast in-kernel: inputs stream from HBM in their native dtype
            p = pred_ref[pl.ds(r0, chunk_rows), :].astype(jnp.float32)
            t = true_ref[pl.ds(r0, chunk_rows), :].astype(jnp.float32)
            if masked:
                row_ids = (b * tile_rows + r0
                           + jax.lax.broadcasted_iota(jnp.int32, (chunk_rows, LANES), 0))
                valid = row_ids < rows
                # Mask BEFORE the multiply: edge-block rows past the array end
                # may hold arbitrary (garbage/NaN) values.
                p = jnp.where(valid, p, 0.0)
                t = jnp.where(valid, t, 0.0)
            # Fold the chunk to one (8, 128) vreg per quantity: pure VPU adds,
            # no XLU cross-lane reduce, no MXU.
            p3 = p.reshape(chunk_rows // SUBLANES, SUBLANES, LANES)
            t3 = t.reshape(chunk_rows // SUBLANES, SUBLANES, LANES)
            out_ref[0] += jnp.sum(p3 * t3, axis=0)   # intersection partial
            out_ref[1] += jnp.sum(p3, axis=0)        # sum(pred)     partial
            out_ref[2] += jnp.sum(t3, axis=0)        # sum(true)     partial

        def fold_block(masked):
            if n_chunks == 1:
                fold(0, masked)
            else:
                @pl.loop(0, n_chunks)
                def _(ci):
                    fold(ci, masked)

        if mask_tail:
            # Only the last real block can contain rows past the array end.
            @pl.when(b == nblocks - 1)
            def _tail():
                fold_block(True)

            @pl.when(b != nblocks - 1)
            def _fast():
                fold_block(False)
        else:
            fold_block(False)


def dice_loss(pred_mask: jax.Array, true_mask: jax.Array, *,
              tile_rows: int = DEFAULT_TILE_ROWS,
              chunk_rows: int = DEFAULT_CHUNK_ROWS,
              ncores: int | None = None) -> jax.Array:
    assert pred_mask.shape == true_mask.shape
    total = pred_mask.size

    pack = max(_sublane_pack(pred_mask.dtype), _sublane_pack(true_mask.dtype))

    pred_flat = pred_mask.reshape(-1)
    true_flat = true_mask.reshape(-1)
    pad = (-total) % (LANES * pack)
    if pad:
        # Rare path: only when the element count is not a multiple of 128*pack.
        pred_flat = jnp.pad(pred_flat, (0, pad))
        true_flat = jnp.pad(true_flat, (0, pad))
    rows = (total + pad) // LANES            # multiple of `pack`

    # Chunk / tile sizing: chunk is the in-kernel fold granularity; tile is the
    # DMA block.  Both are multiples of the dtype sublane-pack.
    chunk_rows = max(pack, min(chunk_rows, rows))
    chunk_rows = _round_up(chunk_rows, pack)
    tile_rows = min(max(tile_rows, chunk_rows), _round_up(rows, chunk_rows))
    tile_rows = _round_up(tile_rows, chunk_rows)
    # Keep double-buffered input blocks within a conservative VMEM budget.
    bytes_per_row = 2 * LANES * (jnp.dtype(pred_mask.dtype).itemsize
                                 + jnp.dtype(true_mask.dtype).itemsize)
    cap = max(chunk_rows,
              (INPUT_BUF_BUDGET // bytes_per_row) // chunk_rows * chunk_rows)
    tile_rows = min(tile_rows, cap)

    pred2d = pred_flat.reshape(rows, LANES)   # reshape only: no extra HBM pass
    true2d = true_flat.reshape(rows, LANES)

    nblocks = pl.cdiv(rows, tile_rows)
    if ncores is None:
        ncores = _num_tensorcores()
    ncores = max(1, min(int(ncores), nblocks))
    steps_per_core = pl.cdiv(nblocks, ncores)
    mask_tail = (rows % tile_rows) != 0

    def in_map(c, s):
        # Clamp to a valid block so the DMA never goes OOB; the kernel skips
        # compute entirely for over-range steps.
        return (jnp.minimum(c * steps_per_core + s, nblocks - 1), 0)

    kernel = functools.partial(
        _dice_partial_kernel,
        tile_rows=tile_rows, chunk_rows=chunk_rows,
        steps_per_core=steps_per_core, nblocks=nblocks, rows=rows,
        mask_tail=mask_tail)

    # TODO(synk): on v7x, verify in the Mosaic dump that the leading "parallel"
    # axis actually shards across both TensorCores; if not, switch it to
    # pltpu.CORE_PARALLEL.
    partials = pl.pallas_call(
        kernel,
        out_shape=jax.ShapeDtypeStruct((ncores, 3, SUBLANES, LANES), jnp.float32),
        grid_spec=pltpu.PrefetchScalarGridSpec(
            num_scalar_prefetch=0,
            grid=(ncores, steps_per_core),
            in_specs=[
                pl.BlockSpec((tile_rows, LANES), in_map),
                pl.BlockSpec((tile_rows, LANES), in_map),
            ],
            out_specs=pl.BlockSpec((None, 3, SUBLANES, LANES),
                                   lambda c, s: (c, 0, 0, 0)),
        ),
        compiler_params=pltpu.CompilerParams(
            dimension_semantics=("parallel", "arbitrary"),
            vmem_limit_bytes=VMEM_LIMIT_BYTES),
    )(pred2d, true2d)

    # Tiny epilogue: cross-lane/sublane/core reduce + dice formula.
    sums = jnp.sum(partials, axis=(0, 2, 3))
    intersection, sum_pred, sum_true = sums[0], sums[1], sums[2]
    union = sum_pred + sum_true
    return 1.0 - (2.0 * intersection + SMOOTH) / (union + SMOOTH)


def _reference(pred, true):
    inter = jnp.sum(pred * true)
    union = jnp.sum(pred) + jnp.sum(true)
    return 1.0 - (2.0 * inter + SMOOTH) / (union + SMOOTH)


if __name__ == "__main__":
    key = jax.random.PRNGKey(0)
    k1, k2, k3, k4 = jax.random.split(key, 4)

    # Small NCHW shapes consistent with a segmentation mask pair.
    pred = jax.nn.sigmoid(jax.random.normal(k1, (2, 4, 16, 16), jnp.float32))
    true = (jax.random.uniform(k2, (2, 4, 16, 16)) > 0.5).astype(jnp.float32)

    loss = dice_loss(pred, true)
    jax.block_until_ready(loss)
    ref = _reference(pred, true)
    assert jnp.allclose(loss, ref, rtol=1e-5, atol=1e-6), (loss, ref)

    # Second tiny case with non-divisible size and small tiles to exercise the
    # multi-block / chunk-loop / masked-tail paths.
    pred2 = jax.nn.sigmoid(jax.random.normal(k3, (2, 4, 16, 17), jnp.float32))
    true2 = (jax.random.uniform(k4, (2, 4, 16, 17)) > 0.5).astype(jnp.float32)
    loss2 = dice_loss(pred2, true2, tile_rows=16, chunk_rows=8)
    jax.block_until_ready(loss2)
    ref2 = _reference(pred2, true2)
    assert jnp.allclose(loss2, ref2, rtol=1e-5, atol=1e-6), (loss2, ref2)

    print("KERNEL_OK")
</pallas_src>

<mosaic_0001>
module attributes {stable_mosaic.version = 11 : i64} {
  func.func @_dice_partial_kernel(%arg0: i32, %arg1: i32, %arg2: memref<16x128xf32, #tpu.memory_space<vmem>>, %arg3: memref<16x128xf32, #tpu.memory_space<vmem>>, %arg4: memref<1x3x8x128xf32, #tpu.memory_space<vmem>>) attributes {dimension_semantics = [#tpu.dimension_semantics<parallel>, #tpu.dimension_semantics<arbitrary>], iteration_bounds = array<i64: 1, 1>, scalar_prefetch = 0 : i64, scratch_operands = 0 : i64, tpu.core_type = #tpu.core_type<tc>, window_params = [{transform_indices = @transform_0, window_bounds = array<i64: 16, 128>}, {transform_indices = @transform_1, window_bounds = array<i64: 16, 128>}, {transform_indices = @transform_2, window_bounds = array<i64: 1, 3, 8, 128>}]} {
    %c0_i32 = arith.constant 0 : i32
    %0 = arith.cmpi eq, %arg1, %c0_i32 : i32
    %1 = arith.extui %0 : i1 to i32
    %c0_i32_0 = arith.constant 0 : i32
    %2 = arith.cmpi ne, %1, %c0_i32_0 : i32
    scf.if %2 {
      %cst = arith.constant 0.000000e+00 : f32
      %8 = vector.broadcast %cst : f32 to vector<3x8x128xf32>
      %c0 = arith.constant 0 : index
      %c0_3 = arith.constant 0 : index
      %c0_4 = arith.constant 0 : index
      %c0_5 = arith.constant 0 : index
      %9 = vector.load %arg4[%c0, %c0_3, %c0_4, %c0_5] : memref<1x3x8x128xf32, #tpu.memory_space<vmem>>, vector<1x3x8x128xf32>
      %10 = vector.shape_cast %9 : vector<1x3x8x128xf32> to vector<3x8x128xf32>
      %11 = vector.shape_cast %8 : vector<3x8x128xf32> to vector<1x3x8x128xf32>
      tpu.vector_store %arg4[%c0, %c0_3, %c0_4, %c0_5], %11 {strides = array<i32>} : memref<1x3x8x128xf32, #tpu.memory_space<vmem>>, vector<1x3x8x128xf32>,
    } else {
    }
    %c1_i32 = arith.constant 1 : i32
    %3 = arith.muli %arg0, %c1_i32 : i32
    %4 = arith.addi %3, %arg1 : i32
    %c1_i32_1 = arith.constant 1 : i32
    %5 = arith.cmpi slt, %4, %c1_i32_1 : i32
    %6 = arith.extui %5 : i1 to i32
    %c0_i32_2 = arith.constant 0 : i32
    %7 = arith.cmpi ne, %6, %c0_i32_2 : i32
    scf.if %7 {
      %c0 = arith.constant 0 : index
      %c0_3 = arith.constant 0 : index
      %8 = vector.load %arg2[%c0, %c0_3] : memref<16x128xf32, #tpu.memory_space<vmem>>, vector<16x128xf32>
      %c0_4 = arith.constant 0 : index
      %c0_5 = arith.constant 0 : index
      %9 = vector.load %arg3[%c0_4, %c0_5] : memref<16x128xf32, #tpu.memory_space<vmem>>, vector<16x128xf32>
      %10 = vector.shape_cast %8 : vector<16x128xf32> to vector<2x8x128xf32>
      %11 = vector.shape_cast %9 : vector<16x128xf32> to vector<2x8x128xf32>
      %c0_6 = arith.constant 0 : index
      %c0_7 = arith.constant 0 : index
      %c0_8 = arith.constant 0 : index
      %c0_9 = arith.constant 0 : index
      %12 = vector.load %arg4[%c0_6, %c0_7, %c0_8, %c0_9] : memref<1x3x8x128xf32, #tpu.memory_space<vmem>>, vector<1x1x8x128xf32>
      %13 = vector.shape_cast %12 : vector<1x1x8x128xf32> to vector<8x128xf32>
      %14 = arith.mulf %10, %11 : vector<2x8x128xf32>
      %cst = arith.constant dense<0.000000e+00> : vector<8x128xf32>
      %15 = vector.multi_reduction <add>, %14, %cst [0] : vector<2x8x128xf32> to vector<8x128xf32>
      %16 = arith.addf %13, %15 : vector<8x128xf32>
      %c0_10 = arith.constant 0 : index
      %c0_11 = arith.constant 0 : index
      %c0_12 = arith.constant 0 : index
      %c0_13 = arith.constant 0 : index
      %17 = vector.load %arg4[%c0_10, %c0_11, %c0_12, %c0_13] : memref<1x3x8x128xf32, #tpu.memory_space<vmem>>, vector<1x1x8x128xf32>
      %18 = vector.shape_cast %17 : vector<1x1x8x128xf32> to vector<8x128xf32>
      %19 = vector.shape_cast %16 : vector<8x128xf32> to vector<1x1x8x128xf32>
      tpu.vector_store %arg4[%c0_10, %c0_11, %c0_12, %c0_13], %19 {strides = array<i32>} : memref<1x3x8x128xf32, #tpu.memory_space<vmem>>, vector<1x1x8x128xf32>,
      %c0_14 = arith.constant 0 : index
      %c1 = arith.constant 1 : index
      %c0_15 = arith.constant 0 : index
      %c0_16 = arith.constant 0 : index
      %20 = vector.load %arg4[%c0_14, %c1, %c0_15, %c0_16] : memref<1x3x8x128xf32, #tpu.memory_space<vmem>>, vector<1x1x8x128xf32>
      %21 = vector.shape_cast %20 : vector<1x1x8x128xf32> to vector<8x128xf32>
      %cst_17 = arith.constant dense<0.000000e+00> : vector<8x128xf32>
      %22 = vector.multi_reduction <add>, %10, %cst_17 [0] : vector<2x8x128xf32> to vector<8x128xf32>
      %23 = arith.addf %21, %22 : vector<8x128xf32>
      %c0_18 = arith.constant 0 : index
      %c1_19 = arith.constant 1 : index
      %c0_20 = arith.constant 0 : index
      %c0_21 = arith.constant 0 : index
      %24 = vector.load %arg4[%c0_18, %c1_19, %c0_20, %c0_21] : memref<1x3x8x128xf32, #tpu.memory_space<vmem>>, vector<1x1x8x128xf32>
      %25 = vector.shape_cast %24 : vector<1x1x8x128xf32> to vector<8x128xf32>
      %26 = vector.shape_cast %23 : vector<8x128xf32> to vector<1x1x8x128xf32>
      tpu.vector_store %arg4[%c0_18, %c1_19, %c0_20, %c0_21], %26 {strides = array<i32>} : memref<1x3x8x128xf32, #tpu.memory_space<vmem>>, vector<1x1x8x128xf32>,
      %c0_22 = arith.constant 0 : index
      %c2 = arith.constant 2 : index
      %c0_23 = arith.constant 0 : index
      %c0_24 = arith.constant 0 : index
      %27 = vector.load %arg4[%c0_22, %c2, %c0_23, %c0_24] : memref<1x3x8x128xf32, #tpu.memory_space<vmem>>, vector<1x1x8x128xf32>
      %28 = vector.shape_cast %27 : vector<1x1x8x128xf32> to vector<8x128xf32>
      %cst_25 = arith.constant dense<0.000000e+00> : vector<8x128xf32>
      %29 = vector.multi_reduction <add>, %11, %cst_25 [0] : vector<2x8x128xf32> to vector<8x128xf32>
      %30 = arith.addf %28, %29 : vector<8x128xf32>
      %c0_26 = arith.constant 0 : index
      %c2_27 = arith.constant 2 : index
      %c0_28 = arith.constant 0 : index
      %c0_29 = arith.constant 0 : index
      %31 = vector.load %arg4[%c0_26, %c2_27, %c0_28, %c0_29] : memref<1x3x8x128xf32, #tpu.memory_space<vmem>>, vector<1x1x8x128xf32>
      %32 = vector.shape_cast %31 : vector<1x1x8x128xf32> to vector<8x128xf32>
      %33 = vector.shape_cast %30 : vector<8x128xf32> to vector<1x1x8x128xf32>
      tpu.vector_store %arg4[%c0_26, %c2_27, %c0_28, %c0_29], %33 {strides = array<i32>} : memref<1x3x8x128xf32, #tpu.memory_space<vmem>>, vector<1x1x8x128xf32>,
    } else {
    }
    return
  }
  func.func @transform_0(%arg0: i32, %arg1: i32) -> (i32, i32) {
    %c1_i32 = arith.constant 1 : i32
    %0 = arith.muli %arg0, %c1_i32 : i32
    %1 = arith.addi %0, %arg1 : i32
    %c0_i32 = arith.constant 0 : i32
    %2 = arith.minsi %1, %c0_i32 : i32
    %c0_i32_0 = arith.constant 0 : i32
    %c0_i32_1 = arith.constant 0 : i32
    return %2, %c0_i32_0 : i32, i32
  }
  func.func @transform_1(%arg0: i32, %arg1: i32) -> (i32, i32) {
    %c1_i32 = arith.constant 1 : i32
    %0 = arith.muli %arg0, %c1_i32 : i32
    %1 = arith.addi %0, %arg1 : i32
    %c0_i32 = arith.constant 0 : i32
    %2 = arith.minsi %1, %c0_i32 : i32
    %c0_i32_0 = arith.constant 0 : i32
    %c0_i32_1 = arith.constant 0 : i32
    return %2, %c0_i32_0 : i32, i32
  }
  func.func @transform_2(%arg0: i32, %arg1: i32) -> (i32, i32, i32, i32) {
    %c0_i32 = arith.constant 0 : i32
    %c0_i32_0 = arith.constant 0 : i32
    %c0_i32_1 = arith.constant 0 : i32
    %c0_i32_2 = arith.constant 0 : i32
    return %arg0, %c0_i32, %c0_i32_0, %c0_i32_1 : i32, i32, i32, i32
  }
}

</mosaic_0001>

<llo_original>
// kernel: tpu_custom_call.1
$region0: #{tpu_custom_call.1}
  #allocation0 [shape = 'u32[]', space=smem, size = 0x4, offset = 0x4, fixed_abs, tag = 'smem constant byte address 0x4 - core index']
  #allocation1 [shape = 'u32[144,128]{1,0:T(1,128)}', space=vmem, size = 0x12000, scoped, tag = 'internal scratch']
  %s0 = inlined_call_operand.hbm [shape: f32[16,128], index: 0, kind: input, shape index: {}]
  %s1 = inlined_call_operand.hbm [shape: f32[16,128], index: 1, kind: input, shape index: {}]
  %s2 = inlined_call_operand.hbm [shape: f32[1,3,8,128], index: 2, kind: output, shape index: {}]
  %s3 = sld [smem:[#allocation0]]
  $region34: #{tpu_custom_call.1} parent=0
    _
  %s5 = ssub.s32 1, %s3
  %s6 = scalar_select 0, %s5, %s3
  $region1: #{tpu_custom_call.1} parent=0
    #allocation2 [shape = 'u8[8192]{0}', space=vmem, size = 0x2000, scoped, tag = 'input window, operand 0, single buffered']
    #allocation3 [shape = 's32[1]{0}', space=sflag, size = 0x4, scoped, tag = 'scoped memory for tpu_custom_call.1']
    #allocation4 [shape = 's32[1]{0}', space=sflag, size = 0x4, scoped, tag = 'scoped memory for tpu_custom_call.1']
    #allocation5 [shape = 'u8[8192]{0}', space=vmem, size = 0x2000, scoped, tag = 'input window, operand 1, single buffered']
    #allocation6 [shape = 's32[1]{0}', space=sflag, size = 0x4, scoped, tag = 'scoped memory for tpu_custom_call.1']
    #allocation7 [shape = 'u8[12288]{0}', space=vmem, size = 0x3000, scoped, tag = 'output window, operand 0, single buffered']
    %7 = vsyncpa [#allocation3], 0
    %8 = vsyncpa [#allocation6], 0
    %9 = vsyncpa [#allocation4], 0
    // Predicated region
    $region2: #{tpu_custom_call.1} parent=1 // pred_check
      _
    $region3: #{tpu_custom_call.1} parent=1 // pred_check_branch
      %11 = sbr.rel (0) target = $region5
    $region4: #{tpu_custom_call.1} parent=1 // pred_region
      %s12 = sadd.s32 0, 0
      %p13 = scmp.lt.s32.totalorder %s12, 0
      %s14 = scalar_select %p13, %s12, 0
      %s15 = smul.u32 2, %s14
      %s17 = ssub.s32 256, 256
      %18 = vsyncadd [#allocation3], %s17
      %s19 = smul.addr %s15, 128
      %s20 = scalar_lea.hbm %s0, %s19
      %s21 = sshll.u32 [#allocation2], 4
      %s22 = int_to_ptr.vmem [resolvable:$true] %s21
      %27 = dma.hbm_to_vmem [thread:$0]  %s20, 256, %s22, [#allocation3], 128, 128, 8
    $region5: #{tpu_custom_call.1} parent=1 // pred_fallthru
      _
    // Predicated region
    $region6: #{tpu_custom_call.1} parent=1 // pred_check
      _
    $region7: #{tpu_custom_call.1} parent=1 // pred_check_branch
      %29 = sbr.rel (0) target = $region9
    $region8: #{tpu_custom_call.1} parent=1 // pred_region
      %s30 = sadd.s32 0, 0
      %p31 = scmp.lt.s32.totalorder %s30, 0
      %s32 = scalar_select %p31, %s30, 0
      %s33 = smul.u32 2, %s32
      %s35 = ssub.s32 256, 256
      %36 = vsyncadd [#allocation6], %s35
      %s37 = smul.addr %s33, 128
      %s38 = scalar_lea.hbm %s1, %s37
      %s39 = sshll.u32 [#allocation5], 4
      %s40 = int_to_ptr.vmem [resolvable:$true] %s39
      %45 = dma.hbm_to_vmem [thread:$0]  %s38, 256, %s40, [#allocation6], 128, 128, 8
    $region9: #{tpu_custom_call.1} parent=1 // pred_fallthru
      _
    // Predicated region
    $region10: #{tpu_custom_call.1} parent=1 // pred_check
      _
    $region11: #{tpu_custom_call.1} parent=1 // pred_check_branch
      %47 = sbr.rel (0) target = $region13
    $region12: #{tpu_custom_call.1} parent=1 // pred_region
      %48 = dma.done [#allocation3], 256
    $region13: #{tpu_custom_call.1} parent=1 // pred_fallthru
      _
    // Predicated region
    $region14: #{tpu_custom_call.1} parent=1 // pred_check
      _
    $region15: #{tpu_custom_call.1} parent=1 // pred_check_branch
      %50 = sbr.rel (0) target = $region17
    $region16: #{tpu_custom_call.1} parent=1 // pred_region
      %51 = dma.done [#allocation6], 256
    $region17: #{tpu_custom_call.1} parent=1 // pred_fallthru
      _
    %s52 = sadd.s32 0, 0
    %p53 = scmp.lt.s32.totalorder %s52, 0
    %s54 = scalar_select %p53, %s52, 0
    %s55 = smul.u32 2, %s54
    %s56 = sadd.s32 0, 0
    %p57 = scmp.lt.s32.totalorder %s56, 0
    %s58 = scalar_select %p57, %s56, 0
    %s59 = smul.u32 2, %s58
    %p60 = scmp.eq.s32.totalorder 0, 0
    // Predicated region
    $region18: #{tpu_custom_call.1} parent=1 // pred_check
      %p61 = pneg %p60
    $region19: #{tpu_custom_call.1} parent=1 // pred_check_branch
      %63 = sbr.rel (%p61) target = $region21
    $region20: #{tpu_custom_call.1} parent=1 // pred_region
      %64 = vst [vmem:[#allocation7] sm:$0xff] 0.0
      %65 = vst [vmem:[#allocation7 + $0x8] sm:$0xff] 0.0
      %66 = vst [vmem:[#allocation7 + $0x10] sm:$0xff] 0.0
    $region21: #{tpu_custom_call.1} parent=1 // pred_fallthru
      _
    %s67 = sadd.s32 0, 0
    %p68 = scmp.lt.s32.totalorder %s67, 1
    // Predicated region
    $region22: #{tpu_custom_call.1} parent=1 // pred_check
      %p69 = pneg %p68
    $region23: #{tpu_custom_call.1} parent=1 // pred_check_branch
      %71 = sbr.rel (%p69) target = $region25
    $region24: #{tpu_custom_call.1} parent=1 // pred_region
      %v72 = vld [vmem:[#allocation2] sm:$0xff]
      %v73 = vld [vmem:[#allocation2 + $0x8] sm:$0xff]
      %v74 = vld [vmem:[#allocation5] sm:$0xff]
      %v75 = vld [vmem:[#allocation5 + $0x8] sm:$0xff]
      %v76 = vld [vmem:[#allocation7] sm:$0xff]
      %v77 = vmul.f32 %v72, %v74
      %v78 = vmul.f32 %v73, %v75
      %v79 = vadd.f32 %v77, %v78
      %v80 = vadd.f32 %v76, %v79
      %81 = vst [vmem:[#allocation7] sm:$0xff] %v80
      %s82 = scalar_lea.vmem [#allocation7], 8
      %v83 = vld [vmem:[%s82] sm:$0xff]
      %v84 = vadd.f32 %v72, %v73
      %v85 = vadd.f32 %v83, %v84
      %86 = vst [vmem:[%s82] sm:$0xff] %v85
      %s87 = scalar_lea.vmem [#allocation7], 16
      %v88 = vld [vmem:[%s87] sm:$0xff]
      %v89 = vadd.f32 %v74, %v75
      %v90 = vadd.f32 %v88, %v89
      %91 = vst [vmem:[%s87] sm:$0xff] %v90
    $region25: #{tpu_custom_call.1} parent=1 // pred_fallthru
      _
    // Predicated region
    $region26: #{tpu_custom_call.1} parent=1 // pred_check
      _
    $region27: #{tpu_custom_call.1} parent=1 // pred_check_branch
      %93 = sbr.rel (0) target = $region29
    $region28: #{tpu_custom_call.1} parent=1 // pred_region
      %s95 = ssub.s32 384, 384
      %96 = vsyncadd [#allocation4], %s95
      %s97 = sshll.u32 [#allocation7], 4
      %s98 = int_to_ptr.vmem [resolvable:$true] %s97
      %103 = dma.vmem_to_hbm [thread:$0]  %s98, 384, %s2, [#allocation4], 128, 128, 8
    $region29: #{tpu_custom_call.1} parent=1 // pred_fallthru
      _
    // Predicated region
    $region30: #{tpu_custom_call.1} parent=1 // pred_check
      _
    $region31: #{tpu_custom_call.1} parent=1 // pred_check_branch
      %105 = sbr.rel (0) target = $region33
    $region32: #{tpu_custom_call.1} parent=1 // pred_region
      %106 = dma.done [#allocation4], 384
    $region33: #{tpu_custom_call.1} parent=1 // pred_fallthru
      _
    %107 = vsyncpa [#allocation3], 1
    %108 = vsyncpa [#allocation6], 1
    %109 = vsyncpa [#allocation4], 1

</llo_original>
